<compile_context>
chip_gen: v7x
topology: tpu7x:2x2x1
jax: 0.10.0
libtpu: 0.0.40
codegen_flags: <defaults>
</compile_context>

<pallas_src>
import functools

import jax
import jax.numpy as jnp
from jax.experimental import pallas as pl
from jax.experimental.pallas import tpu as pltpu

LANE = 128
SUBLANE = 8


def _round_up(x, m):
    return ((x + m - 1) // m) * m


def _elem_loss(pred_ref, cov_ref, tgt_ref, *, smooth_l1, pw):
    """Elementwise diagonal-NLL loss on the current (tm, LANE) tile, in f32.

    pw is the probabilistic weight (compile-time constant); when pw < 1.0 the
    attenuated blend with the plain L1/SmoothL1 loss is fused in.
    """
    pred = pred_ref[...].astype(jnp.float32)
    cov = cov_ref[...].astype(jnp.float32)
    tgt = tgt_ref[...].astype(jnp.float32)

    diff = pred - tgt
    adiff = jnp.abs(diff)
    if smooth_l1:
        # SmoothL1 with beta=1.0 (mmdet default)
        base = jnp.where(adiff < 1.0, 0.5 * diff * diff, adiff - 0.5)
    else:
        base = adiff

    nll = 0.5 * jnp.exp(-cov) * base + 0.5 * cov
    if pw < 1.0:
        # attenuated: pw * NLL + (1 - pw) * standard loss  (fused per element)
        return pw * nll + (1.0 - pw) * base
    return nll


def _nll_sum_kernel(pred_ref, cov_ref, tgt_ref, partial_ref, *, smooth_l1, pw,
                    tm):
    """Per-block (8, LANE) partial sum; no elementwise HBM writeback."""
    loss = _elem_loss(pred_ref, cov_ref, tgt_ref, smooth_l1=smooth_l1, pw=pw)
    # Sublane-aligned strip adds (pure VPU, no cross-lane reduce, no masked
    # store). tm is a static multiple of SUBLANE.
    acc = loss[0:SUBLANE, :]
    for r in range(SUBLANE, tm, SUBLANE):
        acc = acc + loss[r:r + SUBLANE, :]
    partial_ref[...] = acc


def _nll_elem_kernel(pred_ref, cov_ref, tgt_ref, out_ref, *, smooth_l1, pw,
                     scale):
    """Elementwise loss slab (only used for reduction='none'), scale fused."""
    loss = _elem_loss(pred_ref, cov_ref, tgt_ref, smooth_l1=smooth_l1, pw=pw)
    out_ref[...] = (scale * loss).astype(out_ref.dtype)


def nll_loss_diagonal(pred, pred_cov, target, *, reduction="mean",
                      loss_type="L1", loss_weight=1.0,
                      probabilistic_weight=1.0, attenuated=False,
                      avg_factor=None, block_rows=1024):
    """Pallas implementation of NLL.forward (diagonal covariance, weight=None)."""
    # TODO(synk): per-element `weight` tensor and the 'full' covariance path
    # (Cholesky + MultivariateNormal.log_prob) are not implemented here.
    assert pred.shape == pred_cov.shape == target.shape
    assert reduction in ("none", "mean", "sum")
    if loss_type not in ("L1", "SmoothL1"):
        raise ValueError('loss_type should be "L1" or "SmoothL1"')

    pw = float(probabilistic_weight) if attenuated else 1.0
    smooth_l1 = (loss_type == "SmoothL1")

    total = int(pred.size)
    # Lane-dense layout: flatten to (rows, 128); pad rows up to a multiple of tm.
    rows_needed = max(1, pl.cdiv(total, LANE))
    tm = min(int(block_rows), _round_up(rows_needed, SUBLANE))
    tm = max(SUBLANE, _round_up(tm, SUBLANE))
    rows = _round_up(rows_needed, tm)
    padded = rows * LANE

    def to_slab(x):
        flat = x.reshape(-1)
        if padded != total:
            # zero padding => padded elements contribute exactly 0 loss
            # (base(0)=0, cov=0 -> nll=0; blend of zeros is zero).
            flat = jnp.pad(flat, (0, padded - total))
        return flat.reshape(rows, LANE)

    p2, c2, t2 = to_slab(pred), to_slab(pred_cov), to_slab(target)

    num_blocks = rows // tm
    grid = (num_blocks,)
    in_specs = [
        pl.BlockSpec((tm, LANE), lambda i: (i, 0)),
        pl.BlockSpec((tm, LANE), lambda i: (i, 0)),
        pl.BlockSpec((tm, LANE), lambda i: (i, 0)),
    ]

    if reduction == "none":
        kernel = functools.partial(_nll_elem_kernel, smooth_l1=smooth_l1,
                                   pw=pw, scale=float(loss_weight))
        elem = pl.pallas_call(
            kernel,
            out_shape=jax.ShapeDtypeStruct((rows, LANE), pred.dtype),
            grid_spec=pltpu.PrefetchScalarGridSpec(
                num_scalar_prefetch=0,
                grid=grid,
                in_specs=in_specs,
                out_specs=pl.BlockSpec((tm, LANE), lambda i: (i, 0)),
            ),
            compiler_params=pltpu.CompilerParams(
                dimension_semantics=("parallel",)),
        )(p2, c2, t2)
        return elem.reshape(-1)[:total].reshape(pred.shape)

    kernel = functools.partial(_nll_sum_kernel, smooth_l1=smooth_l1, pw=pw,
                               tm=tm)
    partials = pl.pallas_call(
        kernel,
        out_shape=jax.ShapeDtypeStruct((num_blocks * SUBLANE, LANE),
                                       jnp.float32),
        grid_spec=pltpu.PrefetchScalarGridSpec(
            num_scalar_prefetch=0,
            grid=grid,
            in_specs=in_specs,
            out_specs=pl.BlockSpec((SUBLANE, LANE), lambda i: (i, 0)),
        ),
        compiler_params=pltpu.CompilerParams(
            dimension_semantics=("parallel",)),
    )(p2, c2, t2)
    total_sum = jnp.sum(partials)
    if reduction == "sum":
        loss = total_sum
    else:  # mean
        denom = jnp.float32(total) if avg_factor is None else jnp.float32(
            avg_factor)
        loss = total_sum / denom
    return loss_weight * loss


def _reference(pred, pred_cov, target, reduction="mean", loss_type="L1",
               pw=1.0, loss_weight=1.0, avg_factor=None):
    """Pure-JAX reference of the diagonal NLL path (weight=None)."""
    diff = pred - target
    adiff = jnp.abs(diff)
    if loss_type == "SmoothL1":
        base = jnp.where(adiff < 1.0, 0.5 * diff * diff, adiff - 0.5)
    else:
        base = adiff
    nll = 0.5 * jnp.exp(-pred_cov) * base + 0.5 * pred_cov

    def reduce(x):
        if reduction == "mean":
            if avg_factor is None:
                return jnp.mean(x)
            return jnp.sum(x) / avg_factor
        if reduction == "sum":
            return jnp.sum(x)
        return x

    out = pw * reduce(nll)
    if pw < 1.0:
        out = out + (1.0 - pw) * reduce(base)
    return loss_weight * out


if __name__ == "__main__":
    key = jax.random.PRNGKey(0)
    k1, k2, k3 = jax.random.split(key, 3)

    # 64 bbox-delta rows, 4 deltas each (small, module-consistent shape)
    N, D = 64, 4
    pred = jax.random.normal(k1, (N, D), dtype=jnp.float32)
    pred_cov = 0.5 * jax.random.normal(k2, (N, D), dtype=jnp.float32)  # log-var
    target = jax.random.normal(k3, (N, D), dtype=jnp.float32)

    out = jax.block_until_ready(
        nll_loss_diagonal(pred, pred_cov, target, reduction="mean"))
    ref = _reference(pred, pred_cov, target, "mean")
    assert jnp.allclose(out, ref, rtol=1e-5, atol=1e-5), (out, ref)

    out_sum = jax.block_until_ready(
        nll_loss_diagonal(pred, pred_cov, target, reduction="sum"))
    assert jnp.allclose(out_sum, _reference(pred, pred_cov, target, "sum"),
                        rtol=1e-5, atol=1e-4)

    out_none = jax.block_until_ready(
        nll_loss_diagonal(pred, pred_cov, target, reduction="none"))
    assert jnp.allclose(out_none, _reference(pred, pred_cov, target, "none"),
                        rtol=1e-5, atol=1e-5)

    # SmoothL1 variant
    out_s = jax.block_until_ready(
        nll_loss_diagonal(pred, pred_cov, target, reduction="mean",
                          loss_type="SmoothL1"))
    assert jnp.allclose(
        out_s, _reference(pred, pred_cov, target, "mean", "SmoothL1"),
        rtol=1e-5, atol=1e-5)

    # Attenuated blend (probabilistic_weight < 1.0) + loss_weight + avg_factor
    out_att = jax.block_until_ready(
        nll_loss_diagonal(pred, pred_cov, target, reduction="mean",
                          attenuated=True, probabilistic_weight=0.3,
                          loss_weight=2.0, avg_factor=100.0))
    ref_att = _reference(pred, pred_cov, target, "mean", "L1", pw=0.3,
                         loss_weight=2.0, avg_factor=100.0)
    assert jnp.allclose(out_att, ref_att, rtol=1e-5, atol=1e-5), (out_att,
                                                                  ref_att)

    # Multi-block + padding path (still small): 100 rows, forced small tile
    k4, k5, k6 = jax.random.split(jax.random.PRNGKey(0), 3)
    N2 = 100
    p2 = jax.random.normal(k4, (N2, D), dtype=jnp.float32)
    c2 = 0.5 * jax.random.normal(k5, (N2, D), dtype=jnp.float32)
    t2 = jax.random.normal(k6, (N2, D), dtype=jnp.float32)
    out2 = jax.block_until_ready(
        nll_loss_diagonal(p2, c2, t2, reduction="mean", block_rows=8))
    assert jnp.allclose(out2, _reference(p2, c2, t2, "mean"),
                        rtol=1e-5, atol=1e-5)

    # bf16 inputs stream natively (cast to f32 inside the kernel)
    out_bf = jax.block_until_ready(
        nll_loss_diagonal(pred.astype(jnp.bfloat16),
                          pred_cov.astype(jnp.bfloat16),
                          target.astype(jnp.bfloat16), reduction="mean"))
    assert jnp.allclose(out_bf, ref, rtol=2e-2, atol=2e-2)

    print("KERNEL_OK")
</pallas_src>

<mosaic_0001>
module attributes {stable_mosaic.version = 11 : i64} {
  func.func @_nll_sum_kernel(%arg0: i32, %arg1: memref<8x128xf32, #tpu.memory_space<vmem>>, %arg2: memref<8x128xf32, #tpu.memory_space<vmem>>, %arg3: memref<8x128xf32, #tpu.memory_space<vmem>>, %arg4: memref<8x128xf32, #tpu.memory_space<vmem>>) attributes {dimension_semantics = [#tpu.dimension_semantics<parallel>], iteration_bounds = array<i64: 1>, scalar_prefetch = 0 : i64, scratch_operands = 0 : i64, tpu.core_type = #tpu.core_type<tc>, window_params = [{transform_indices = @transform_0, window_bounds = array<i64: 8, 128>}, {transform_indices = @transform_1, window_bounds = array<i64: 8, 128>}, {transform_indices = @transform_2, window_bounds = array<i64: 8, 128>}, {transform_indices = @transform_3, window_bounds = array<i64: 8, 128>}]} {
    %c0 = arith.constant 0 : index
    %c0_0 = arith.constant 0 : index
    %0 = vector.load %arg1[%c0, %c0_0] : memref<8x128xf32, #tpu.memory_space<vmem>>, vector<8x128xf32>
    %c0_1 = arith.constant 0 : index
    %c0_2 = arith.constant 0 : index
    %1 = vector.load %arg2[%c0_1, %c0_2] : memref<8x128xf32, #tpu.memory_space<vmem>>, vector<8x128xf32>
    %c0_3 = arith.constant 0 : index
    %c0_4 = arith.constant 0 : index
    %2 = vector.load %arg3[%c0_3, %c0_4] : memref<8x128xf32, #tpu.memory_space<vmem>>, vector<8x128xf32>
    %3 = arith.subf %0, %2 : vector<8x128xf32>
    %4 = math.absf %3 : vector<8x128xf32>
    %cst = arith.constant 0.000000e+00 : f32
    %5 = vector.broadcast %cst : f32 to vector<8x128xf32>
    %6 = arith.subf %5, %1 : vector<8x128xf32>
    %7 = math.exp %6 : vector<8x128xf32>
    %cst_5 = arith.constant 5.000000e-01 : f32
    %8 = vector.broadcast %cst_5 : f32 to vector<8x128xf32>
    %9 = arith.mulf %8, %7 : vector<8x128xf32>
    %10 = arith.mulf %9, %4 : vector<8x128xf32>
    %cst_6 = arith.constant 5.000000e-01 : f32
    %11 = vector.broadcast %cst_6 : f32 to vector<8x128xf32>
    %12 = arith.mulf %11, %1 : vector<8x128xf32>
    %13 = arith.addf %10, %12 : vector<8x128xf32>
    %c0_7 = arith.constant 0 : index
    %c0_8 = arith.constant 0 : index
    %14 = vector.load %arg4[%c0_7, %c0_8] : memref<8x128xf32, #tpu.memory_space<vmem>>, vector<8x128xf32>
    tpu.vector_store %arg4[%c0_7, %c0_8], %13 {strides = array<i32>} : memref<8x128xf32, #tpu.memory_space<vmem>>, vector<8x128xf32>,
    return
  }
  func.func @transform_0(%arg0: i32) -> (i32, i32) {
    %c0_i32 = arith.constant 0 : i32
    %c0_i32_0 = arith.constant 0 : i32
    return %arg0, %c0_i32 : i32, i32
  }
  func.func @transform_1(%arg0: i32) -> (i32, i32) {
    %c0_i32 = arith.constant 0 : i32
    %c0_i32_0 = arith.constant 0 : i32
    return %arg0, %c0_i32 : i32, i32
  }
  func.func @transform_2(%arg0: i32) -> (i32, i32) {
    %c0_i32 = arith.constant 0 : i32
    %c0_i32_0 = arith.constant 0 : i32
    return %arg0, %c0_i32 : i32, i32
  }
  func.func @transform_3(%arg0: i32) -> (i32, i32) {
    %c0_i32 = arith.constant 0 : i32
    %c0_i32_0 = arith.constant 0 : i32
    return %arg0, %c0_i32 : i32, i32
  }
}

</mosaic_0001>

<llo_original>
// kernel: tpu_custom_call.1
$region0: #{tpu_custom_call.1}
  #allocation0 [shape = 'u32[]', space=smem, size = 0x4, offset = 0x4, fixed_abs, tag = 'smem constant byte address 0x4 - core index']
  #allocation1 [shape = 'u32[144,128]{1,0:T(1,128)}', space=vmem, size = 0x12000, scoped, tag = 'internal scratch']
  %s0 = inlined_call_operand.hbm [shape: f32[8,128], index: 0, kind: input, shape index: {}]
  %s1 = inlined_call_operand.hbm [shape: f32[8,128], index: 1, kind: input, shape index: {}]
  %s2 = inlined_call_operand.hbm [shape: f32[8,128], index: 2, kind: input, shape index: {}]
  %s3 = inlined_call_operand.hbm [shape: f32[8,128], index: 3, kind: output, shape index: {}]
  %s4 = sld [smem:[#allocation0]]
  $region34: #{tpu_custom_call.1} parent=0
    _
  %s6 = ssub.s32 1, %s4
  %s7 = scalar_select 0, %s6, %s4
  $region1: #{tpu_custom_call.1} parent=0
    #allocation2 [shape = 'u8[4096]{0}', space=vmem, size = 0x1000, scoped, tag = 'input window, operand 0, single buffered']
    #allocation3 [shape = 's32[1]{0}', space=sflag, size = 0x4, scoped, tag = 'scoped memory for tpu_custom_call.1']
    #allocation4 [shape = 's32[1]{0}', space=sflag, size = 0x4, scoped, tag = 'scoped memory for tpu_custom_call.1']
    #allocation5 [shape = 'u8[4096]{0}', space=vmem, size = 0x1000, scoped, tag = 'input window, operand 1, single buffered']
    #allocation6 [shape = 's32[1]{0}', space=sflag, size = 0x4, scoped, tag = 'scoped memory for tpu_custom_call.1']
    #allocation7 [shape = 'u8[4096]{0}', space=vmem, size = 0x1000, scoped, tag = 'input window, operand 2, single buffered']
    #allocation8 [shape = 'u8[4096]{0}', space=vmem, size = 0x1000, scoped, tag = 'output window, operand 0, single buffered']
    %8 = vsyncpa [#allocation3], 0
    %9 = vsyncpa [#allocation6], 0
    %10 = vsyncpa [#allocation4], 0
    // Predicated region
    $region2: #{tpu_custom_call.1} parent=1 // pred_check
      _
    $region3: #{tpu_custom_call.1} parent=1 // pred_check_branch
      %12 = sbr.rel (0) target = $region5
    $region4: #{tpu_custom_call.1} parent=1 // pred_region
      %s14 = ssub.s32 128, 128
      %15 = vsyncadd [#allocation3], %s14
      %s17 = sshll.u32 [#allocation2], 4
      %s18 = int_to_ptr.vmem [resolvable:$true] %s17
      %20 = dma.hbm_to_vmem [thread:$0]  %s0, 128, %s18, [#allocation3]
    $region5: #{tpu_custom_call.1} parent=1 // pred_fallthru
      _
    // Predicated region
    $region6: #{tpu_custom_call.1} parent=1 // pred_check
      _
    $region7: #{tpu_custom_call.1} parent=1 // pred_check_branch
      %22 = sbr.rel (0) target = $region9
    $region8: #{tpu_custom_call.1} parent=1 // pred_region
      %s24 = ssub.s32 128, 128
      %25 = vsyncadd [#allocation6], %s24
      %s27 = sshll.u32 [#allocation5], 4
      %s28 = int_to_ptr.vmem [resolvable:$true] %s27
      %30 = dma.hbm_to_vmem [thread:$0]  %s1, 128, %s28, [#allocation6]
    $region9: #{tpu_custom_call.1} parent=1 // pred_fallthru
      _
    // Predicated region
    $region10: #{tpu_custom_call.1} parent=1 // pred_check
      _
    $region11: #{tpu_custom_call.1} parent=1 // pred_check_branch
      %32 = sbr.rel (0) target = $region13
    $region12: #{tpu_custom_call.1} parent=1 // pred_region
      %s34 = ssub.s32 128, 128
      %35 = vsyncadd [#allocation6], %s34
      %s37 = sshll.u32 [#allocation7], 4
      %s38 = int_to_ptr.vmem [resolvable:$true] %s37
      %40 = dma.hbm_to_vmem [thread:$0]  %s2, 128, %s38, [#allocation6]
    $region13: #{tpu_custom_call.1} parent=1 // pred_fallthru
      _
    // Predicated region
    $region14: #{tpu_custom_call.1} parent=1 // pred_check
      _
    $region15: #{tpu_custom_call.1} parent=1 // pred_check_branch
      %42 = sbr.rel (0) target = $region17
    $region16: #{tpu_custom_call.1} parent=1 // pred_region
      %43 = dma.done [#allocation3], 128
    $region17: #{tpu_custom_call.1} parent=1 // pred_fallthru
      _
    // Predicated region
    $region18: #{tpu_custom_call.1} parent=1 // pred_check
      _
    $region19: #{tpu_custom_call.1} parent=1 // pred_check_branch
      %45 = sbr.rel (0) target = $region21
    $region20: #{tpu_custom_call.1} parent=1 // pred_region
      %46 = dma.done [#allocation6], 128
    $region21: #{tpu_custom_call.1} parent=1 // pred_fallthru
      _
    // Predicated region
    $region22: #{tpu_custom_call.1} parent=1 // pred_check
      _
    $region23: #{tpu_custom_call.1} parent=1 // pred_check_branch
      %48 = sbr.rel (0) target = $region25
    $region24: #{tpu_custom_call.1} parent=1 // pred_region
      %49 = dma.done [#allocation6], 128
    $region25: #{tpu_custom_call.1} parent=1 // pred_fallthru
      _
    %v50 = vld [vmem:[#allocation2] sm:$0xff]
    %v51 = vld [vmem:[#allocation5] sm:$0xff]
    %v52 = vld [vmem:[#allocation7] sm:$0xff]
    %v53 = vsub.f32 %v50, %v52
    %v54 = vand.u32 2147483647, %v53
    %v55 = vsub.f32 0.0, %v51
    %v56 = vmul.f32 %v55, 1.442695
    %v57 = vpow.pop %v56
    %v58 = vmul.f32 %v57, 0.5
    %v59 = vmul.f32 %v58, %v54
    %v60 = vmul.f32 %v51, 0.5
    %v61 = vadd.f32 %v59, %v60
    %62 = vst [vmem:[#allocation8] sm:$0xff] %v61
    // Predicated region
    $region26: #{tpu_custom_call.1} parent=1 // pred_check
      _
    $region27: #{tpu_custom_call.1} parent=1 // pred_check_branch
      %64 = sbr.rel (0) target = $region29
    $region28: #{tpu_custom_call.1} parent=1 // pred_region
      %s66 = ssub.s32 128, 128
      %67 = vsyncadd [#allocation4], %s66
      %s69 = sshll.u32 [#allocation8], 4
      %s70 = int_to_ptr.vmem [resolvable:$true] %s69
      %72 = dma.vmem_to_hbm [thread:$0]  %s70, 128, %s3, [#allocation4]
    $region29: #{tpu_custom_call.1} parent=1 // pred_fallthru
      _
    // Predicated region
    $region30: #{tpu_custom_call.1} parent=1 // pred_check
      _
    $region31: #{tpu_custom_call.1} parent=1 // pred_check_branch
      %74 = sbr.rel (0) target = $region33
    $region32: #{tpu_custom_call.1} parent=1 // pred_region
      %75 = dma.done [#allocation4], 128
    $region33: #{tpu_custom_call.1} parent=1 // pred_fallthru
      _
    %76 = vsyncpa [#allocation3], 1
    %77 = vsyncpa [#allocation6], 1
    %78 = vsyncpa [#allocation4], 1

</llo_original>
